<compile_context>
chip_gen: v6e
topology: v6e:2x2x1
jax: 0.10.0
libtpu: 0.0.40
codegen_flags: <defaults>
</compile_context>

<pallas_src>
import functools

import jax
import jax.numpy as jnp
from jax.experimental import pallas as pl
from jax.experimental.pallas import tpu as pltpu

_LANES = 128
# v7x has 2 TensorCores per chip; on 1-TC chips (v5e/v6e) the extra grid slice
# just runs sequentially on the same core and is fully masked / near-free.
_NUM_CORES = 2
# Target ~4 MiB per input tile (per grid step): 2 inputs x 2 pipeline buffers
# = 16 MiB of VMEM, hidden-overhead-friendly even at v7x HBM bandwidth.
_TARGET_TILE_BYTES = 4 * 1024 * 1024
_VMEM_LIMIT_BYTES = 32 * 1024 * 1024


def _mse_kernel(x_ref, y_ref, o_ref, *, steps_per_core, chunk_rows,
                valid_rows, needs_mask):
    # x_ref / y_ref: (block_rows, 128) input tiles in VMEM (native dtype).
    # o_ref:         (1, 8, 128) f32 per-core partial-sum block, resident in
    #                VMEM across the whole "arbitrary" step axis.
    c = pl.program_id(0)   # core-parallel axis
    i = pl.program_id(1)   # sequential reduction axis

    @pl.when(i == 0)
    def _():
        o_ref[...] = jnp.zeros_like(o_ref)

    block_rows = x_ref.shape[0]
    n_chunks = block_rows // chunk_rows
    # Logical (unclamped) block index of this tile inside the slab; used only
    # for masking, so trailing fully-out-of-range tiles contribute exactly 0.
    block_idx = c * steps_per_core + i
    row_base = block_idx * block_rows

    def body(j, acc):
        r0 = pl.multiple_of(j * chunk_rows, chunk_rows)
        xs = x_ref[pl.ds(r0, chunk_rows), :].astype(jnp.float32)
        ys = y_ref[pl.ds(r0, chunk_rows), :].astype(jnp.float32)
        d = xs - ys
        sq = d * d
        if needs_mask:
            # Rows at/after valid_rows are padding (unspecified data) or
            # belong to a clamped out-of-range tile: select them away.
            row_ids = row_base + r0 + jax.lax.broadcasted_iota(
                jnp.int32, sq.shape, 0)
            sq = jnp.where(row_ids < valid_rows, sq, jnp.float32(0.0))
        # (chunk_rows//8, 8, 128) split lands on native vreg boundaries; the
        # axis-0 sum is a plain chain of VALU vreg adds (no cross-lane work).
        return acc + sq.reshape(chunk_rows // 8, 8, _LANES).sum(axis=0)

    acc = jax.lax.fori_loop(0, n_chunks, body,
                            jnp.zeros((8, _LANES), jnp.float32), unroll=True)
    o_ref[...] += acc[None, :, :]


def mse_loss(x, y):
    """((x - y)**2).mean() over all elements, as a float32 scalar."""
    assert x.shape == y.shape, (x.shape, y.shape)
    n = x.size
    assert n > 0

    xf = x.reshape(-1)
    yf = y.reshape(-1)

    n_main = (n // _LANES) * _LANES
    tail_sum = jnp.float32(0.0)
    if n_main < n:
        # Ragged lane tail (< 128 elements): tiny plain-JAX contribution.
        xt = xf[n_main:].astype(jnp.float32)
        yt = yf[n_main:].astype(jnp.float32)
        tail_sum = jnp.sum((xt - yt) ** 2)
    if n_main == 0:
        return tail_sum / jnp.float32(n)

    rows = n_main // _LANES
    xs = xf[:n_main].reshape(rows, _LANES)   # free when n % 128 == 0
    ys = yf[:n_main].reshape(rows, _LANES)

    itemsize = int(jnp.dtype(x.dtype).itemsize)
    # Sublane alignment (8 rows for 4-byte dtypes, 16 for 2-byte, ...).
    row_align = max(8, 32 // max(itemsize, 1))
    # Small compute chunk (bounds in-kernel f32 temporaries to ~128-256 KiB).
    chunk_rows = row_align * 32
    # Size the DMA tile by bytes, rounded to a whole number of chunks, and
    # don't allocate more rows than needed to cover the slab.
    target_rows = max(chunk_rows, _TARGET_TILE_BYTES // (_LANES * itemsize))
    br = (target_rows // chunk_rows) * chunk_rows
    br = min(br, pl.cdiv(rows, chunk_rows) * chunk_rows)

    num_blocks = pl.cdiv(rows, br)
    steps_per_core = pl.cdiv(num_blocks, _NUM_CORES)
    covered_rows = _NUM_CORES * steps_per_core * br
    needs_mask = covered_rows > rows   # static Python bool

    kernel = functools.partial(
        _mse_kernel,
        steps_per_core=steps_per_core,
        chunk_rows=chunk_rows,
        valid_rows=rows,
        needs_mask=needs_mask,
    )

    def in_map(c, i):
        # Clamp so trailing (fully masked) grid steps re-use the last valid
        # block instead of pointing past the array; their contribution is
        # zeroed inside the kernel via the unclamped row-id mask.
        return (jnp.minimum(c * steps_per_core + i, num_blocks - 1), 0)

    partials = pl.pallas_call(
        kernel,
        out_shape=jax.ShapeDtypeStruct((_NUM_CORES, 8, _LANES), jnp.float32),
        grid_spec=pltpu.PrefetchScalarGridSpec(
            num_scalar_prefetch=0,
            grid=(_NUM_CORES, steps_per_core),
            in_specs=[
                pl.BlockSpec((br, _LANES), in_map),
                pl.BlockSpec((br, _LANES), in_map),
            ],
            out_specs=pl.BlockSpec((1, 8, _LANES), lambda c, i: (c, 0, 0)),
        ),
        compiler_params=pltpu.CompilerParams(
            # Core axis shards across TensorCores (v7x); step axis carries the
            # resident accumulator so it must be "arbitrary".
            dimension_semantics=("parallel", "arbitrary"),
            vmem_limit_bytes=_VMEM_LIMIT_BYTES,
        ),
        cost_estimate=pl.CostEstimate(
            flops=3 * n_main,
            transcendentals=0,
            bytes_accessed=2 * n_main * itemsize + _NUM_CORES * 8 * _LANES * 4,
        ),
    )(xs, ys)

    total = jnp.sum(partials) + tail_sum
    return total / jnp.float32(n)


if __name__ == "__main__":
    key = jax.random.PRNGKey(0)
    k1, k2 = jax.random.split(key)
    # NCHW inputs, as the PyTorch module would receive.
    x = jax.random.normal(k1, (2, 4, 16, 16), dtype=jnp.float32)
    t = jax.random.normal(k2, (2, 4, 16, 16), dtype=jnp.float32)

    loss = jax.block_until_ready(mse_loss(x, t))

    # Reference check in plain JAX.
    ref = jnp.mean((x - t) ** 2)
    assert jnp.allclose(loss, ref, rtol=1e-5, atol=1e-6), (loss, ref)

    print("KERNEL_OK")
</pallas_src>

<mosaic_0001>
module attributes {stable_mosaic.version = 11 : i64} {
  func.func @_mse_kernel(%arg0: i32, %arg1: i32, %arg2: memref<256x128xf32, #tpu.memory_space<vmem>>, %arg3: memref<256x128xf32, #tpu.memory_space<vmem>>, %arg4: memref<1x8x128xf32, #tpu.memory_space<vmem>>) attributes {dimension_semantics = [#tpu.dimension_semantics<parallel>, #tpu.dimension_semantics<arbitrary>], iteration_bounds = array<i64: 2, 1>, scalar_prefetch = 0 : i64, scratch_operands = 0 : i64, tpu.core_type = #tpu.core_type<tc>, window_params = [{transform_indices = @transform_0, window_bounds = array<i64: 256, 128>}, {transform_indices = @transform_1, window_bounds = array<i64: 256, 128>}, {transform_indices = @transform_2, window_bounds = array<i64: 1, 8, 128>}]} {
    %c0_i32 = arith.constant 0 : i32
    %0 = arith.cmpi eq, %arg1, %c0_i32 : i32
    %1 = arith.extui %0 : i1 to i32
    %c0_i32_0 = arith.constant 0 : i32
    %2 = arith.cmpi ne, %1, %c0_i32_0 : i32
    scf.if %2 {
      %cst_13 = arith.constant 0.000000e+00 : f32
      %30 = vector.broadcast %cst_13 : f32 to vector<1x8x128xf32>
      %c0_14 = arith.constant 0 : index
      %c0_15 = arith.constant 0 : index
      %c0_16 = arith.constant 0 : index
      %31 = vector.load %arg4[%c0_14, %c0_15, %c0_16] : memref<1x8x128xf32, #tpu.memory_space<vmem>>, vector<1x8x128xf32>
      tpu.vector_store %arg4[%c0_14, %c0_15, %c0_16], %30 {strides = array<i32>} : memref<1x8x128xf32, #tpu.memory_space<vmem>>, vector<1x8x128xf32>,
    } else {
    }
    %c1_i32 = arith.constant 1 : i32
    %3 = arith.muli %arg0, %c1_i32 : i32
    %4 = arith.addi %3, %arg1 : i32
    %c256_i32 = arith.constant 256 : i32
    %5 = arith.muli %4, %c256_i32 : i32
    %cst = arith.constant 0.000000e+00 : f32
    %6 = vector.broadcast %cst : f32 to vector<8x128xf32>
    %c0_i32_1 = arith.constant 0 : i32
    %c256_i32_2 = arith.constant 256 : i32
    %7 = arith.muli %c0_i32_1, %c256_i32_2 : i32
    %8 = tpu.assume_multiple %7, 256 : i32
    %9 = arith.index_cast %8 : i32 to index
    %c0 = arith.constant 0 : index
    %10 = vector.load %arg2[%9, %c0] : memref<256x128xf32, #tpu.memory_space<vmem>>, vector<256x128xf32>
    %11 = arith.index_cast %8 : i32 to index
    %c0_3 = arith.constant 0 : index
    %12 = vector.load %arg3[%11, %c0_3] : memref<256x128xf32, #tpu.memory_space<vmem>>, vector<256x128xf32>
    %13 = arith.subf %10, %12 : vector<256x128xf32>
    %14 = arith.mulf %13, %13 : vector<256x128xf32>
    %15 = arith.addi %5, %8 : i32
    %16 = tpu.iota {dimensions = array<i32: 0>} : vector<256x128xi32>
    %17 = vector.broadcast %15 : i32 to vector<256x128xi32>
    %18 = arith.addi %17, %16 : vector<256x128xi32>
    %c16_i32 = arith.constant 16 : i32
    %19 = vector.broadcast %c16_i32 : i32 to vector<256x128xi32>
    %20 = arith.cmpi slt, %18, %19 : vector<256x128xi32>
    %cst_4 = arith.constant 0.000000e+00 : f32
    %21 = vector.broadcast %cst_4 : f32 to vector<256x128xf32>
    %22 = arith.select %20, %14, %21 : vector<256x128xi1>, vector<256x128xf32>
    %23 = vector.shape_cast %22 : vector<256x128xf32> to vector<32x8x128xf32>
    %cst_5 = arith.constant dense<0.000000e+00> : vector<8x128xf32>
    %24 = vector.multi_reduction <add>, %23, %cst_5 [0] : vector<32x8x128xf32> to vector<8x128xf32>
    %25 = arith.addf %6, %24 : vector<8x128xf32>
    %c1_i32_6 = arith.constant 1 : i32
    %c0_7 = arith.constant 0 : index
    %c0_8 = arith.constant 0 : index
    %c0_9 = arith.constant 0 : index
    %26 = vector.load %arg4[%c0_7, %c0_8, %c0_9] : memref<1x8x128xf32, #tpu.memory_space<vmem>>, vector<1x8x128xf32>
    %27 = vector.shape_cast %25 : vector<8x128xf32> to vector<1x8x128xf32>
    %28 = arith.addf %26, %27 : vector<1x8x128xf32>
    %c0_10 = arith.constant 0 : index
    %c0_11 = arith.constant 0 : index
    %c0_12 = arith.constant 0 : index
    %29 = vector.load %arg4[%c0_10, %c0_11, %c0_12] : memref<1x8x128xf32, #tpu.memory_space<vmem>>, vector<1x8x128xf32>
    tpu.vector_store %arg4[%c0_10, %c0_11, %c0_12], %28 {strides = array<i32>} : memref<1x8x128xf32, #tpu.memory_space<vmem>>, vector<1x8x128xf32>,
    return
  }
  func.func @transform_0(%arg0: i32, %arg1: i32) -> (i32, i32) {
    %c1_i32 = arith.constant 1 : i32
    %0 = arith.muli %arg0, %c1_i32 : i32
    %1 = arith.addi %0, %arg1 : i32
    %c0_i32 = arith.constant 0 : i32
    %2 = arith.minsi %1, %c0_i32 : i32
    %c0_i32_0 = arith.constant 0 : i32
    %c0_i32_1 = arith.constant 0 : i32
    return %2, %c0_i32_0 : i32, i32
  }
  func.func @transform_1(%arg0: i32, %arg1: i32) -> (i32, i32) {
    %c1_i32 = arith.constant 1 : i32
    %0 = arith.muli %arg0, %c1_i32 : i32
    %1 = arith.addi %0, %arg1 : i32
    %c0_i32 = arith.constant 0 : i32
    %2 = arith.minsi %1, %c0_i32 : i32
    %c0_i32_0 = arith.constant 0 : i32
    %c0_i32_1 = arith.constant 0 : i32
    return %2, %c0_i32_0 : i32, i32
  }
  func.func @transform_2(%arg0: i32, %arg1: i32) -> (i32, i32, i32) {
    %c0_i32 = arith.constant 0 : i32
    %c0_i32_0 = arith.constant 0 : i32
    %c0_i32_1 = arith.constant 0 : i32
    return %arg0, %c0_i32, %c0_i32_0 : i32, i32, i32
  }
}

</mosaic_0001>

<llo_original>
// kernel: tpu_custom_call.1
$region0: #{tpu_custom_call.1}
  #allocation0 [shape = 'u32[]', space=smem, size = 0x4, offset = 0x4, fixed_abs, tag = 'smem constant byte address 0x4 - core index']
  #allocation1 [shape = 'u32[144,128]{1,0:T(1,128)}', space=vmem, size = 0x12000, scoped, tag = 'internal scratch']
  %s0 = inlined_call_operand.hbm [shape: f32[16,128], index: 0, kind: input, shape index: {}]
  %s1 = inlined_call_operand.hbm [shape: f32[16,128], index: 1, kind: input, shape index: {}]
  %s2 = inlined_call_operand.hbm [shape: f32[2,8,128], index: 2, kind: output, shape index: {}]
  %s3 = sld [smem:[#allocation0]]
  $region53: #{tpu_custom_call.1} parent=0
    _
  %s5 = ssub.s32 1, %s3
  %s6 = scalar_select 0, %s5, %s3
  $region1: #{tpu_custom_call.1} parent=0
    #allocation2 [shape = 'u8[262144]{0}', space=vmem, size = 0x40000, scoped, tag = 'input window, operand 0']
    #allocation3 [shape = 's32[2]{0}', space=sflag, size = 0x8, scoped, tag = 'scoped memory for tpu_custom_call.1']
    #allocation4 [shape = 's32[2]{0}', space=sflag, size = 0x8, scoped, tag = 'scoped memory for tpu_custom_call.1']
    #allocation5 [shape = 'u8[262144]{0}', space=vmem, size = 0x40000, scoped, tag = 'input window, operand 1']
    #allocation6 [shape = 's32[2]{0}', space=sflag, size = 0x8, scoped, tag = 'scoped memory for tpu_custom_call.1']
    #allocation7 [shape = 'u8[8192]{0}', space=vmem, size = 0x2000, scoped, tag = 'output window, operand 0']
    %7 = vsyncpa [#allocation3], 0
    %s8 = scalar_lea.sflag [#allocation3], 1
    %9 = vsyncpa %s8, 0
    %10 = vsyncpa [#allocation6], 0
    %s11 = scalar_lea.sflag [#allocation6], 1
    %12 = vsyncpa %s11, 0
    %13 = vsyncpa [#allocation4], 0
    %s14 = scalar_lea.sflag [#allocation4], 1
    %15 = vsyncpa %s14, 0
    loop: start=0, step=1, limit=4
    $region2: #{tpu_custom_call.1} parent=1 // loop_pre_header
      _
    $region3: #{tpu_custom_call.1} parent=1 // loop_header
      %s17 = sphi 0, %s21
      %p18 = scmp.ge.s32.totalorder %s17, 4
      %s24 = sphi 0, %s36
      %s25 = sphi 0, %s32
      %s26 = sphi 0, %s24
      %s27 = sphi 0, %s25
      %s28 = sphi 0, %s26
      %s29 = sphi 0, %s27
      %s45 = sphi 0, %s47
      %s48 = sphi 0, %s45
      %s49 = sphi 0, %s48
      %s65 = sphi 0, %s49
      %s77 = sphi 0, %s79
      %s80 = sphi 0, %s77
      %s81 = sphi 0, %s80
      %s97 = sphi 0, %s81
      %s103 = sphi 0, %s105
      %s106 = sphi 0, %s103
      %s107 = sphi 0, %s106
      %s123 = sphi 0, %s107
    $region4: #{tpu_custom_call.1} parent=1 // loop_header_branch
      %20 = sbr.rel (%p18) target = $region8
    $region5: #{tpu_custom_call.1} parent=1 // loop_body
      %s22 = ssub.s32 %s17, 1
      %s23 = ssub.s32 %s17, 2
      %s30 = sadd.s32 1, %s25
      %p31 = scmp.ge.s32.totalorder %s30, 1
      %s32 = scalar_select %p31, 0, %s30
      %s33 = sadd.s32 1, %s24
      %s34 = scalar_select %p31, %s33, %s24
      %p35 = scmp.ge.s32.totalorder %s34, 2
      %s36 = scalar_select %p35, 0, %s34
      %s37 = sadd.s32 %s24, %s25
      %p38 = scmp.lt.s32.totalorder %s37, 0
      %s39 = scalar_select %p38, %s37, 0
      %s40 = sadd.s32 %s36, %s32
      %p41 = scmp.lt.s32.totalorder %s40, 0
      %s42 = scalar_select %p41, %s40, 0
      %s43 = ssub.s32 %s39, %s42
      %p44 = scmp.eq.s32.totalorder %s43, 0
      %s46 = sadd.s32 %s45, 1
      %s47 = scalar_select %p44, %s45, %s46
      %p50 = pneg %p44
      %p51 = scmp.eq.s32.totalorder %s17, 1
      %p52 = por %p50, %p51
      %p53 = scmp.ne.s32.totalorder %s45, %s48
      %p54 = scmp.eq.s32.totalorder %s17, 0
      %p55 = por %p53, %p54
      %p56 = scmp.ne.s32.totalorder %s45, %s48
      %p57 = scmp.eq.s32.totalorder %s22, 1
      %p58 = por %p56, %p57
      %p59 = scmp.ne.s32.totalorder %s48, %s49
      %p60 = scmp.eq.s32.totalorder %s22, 0
      %p61 = por %p59, %p60
      %p62 = scmp.ne.s32.totalorder %s48, %s49
      %p63 = scmp.eq.s32.totalorder %s23, 1
      %p64 = por %p62, %p63
      %p66 = scmp.ne.s32.totalorder %s49, %s65
      %p67 = scmp.eq.s32.totalorder %s23, 0
      %p68 = por %p66, %p67
      %s69 = sadd.s32 %s24, %s25
      %p70 = scmp.lt.s32.totalorder %s69, 0
      %s71 = scalar_select %p70, %s69, 0
      %s72 = sadd.s32 %s36, %s32
      %p73 = scmp.lt.s32.totalorder %s72, 0
      %s74 = scalar_select %p73, %s72, 0
      %s75 = ssub.s32 %s71, %s74
      %p76 = scmp.eq.s32.totalorder %s75, 0
      %s78 = sadd.s32 %s77, 1
      %s79 = scalar_select %p76, %s77, %s78
      %p82 = pneg %p76
      %p83 = scmp.eq.s32.totalorder %s17, 1
      %p84 = por %p82, %p83
      %p85 = scmp.ne.s32.totalorder %s77, %s80
      %p86 = scmp.eq.s32.totalorder %s17, 0
      %p87 = por %p85, %p86
      %p88 = scmp.ne.s32.totalorder %s77, %s80
      %p89 = scmp.eq.s32.totalorder %s22, 1
      %p90 = por %p88, %p89
      %p91 = scmp.ne.s32.totalorder %s80, %s81
      %p92 = scmp.eq.s32.totalorder %s22, 0
      %p93 = por %p91, %p92
      %p94 = scmp.ne.s32.totalorder %s80, %s81
      %p95 = scmp.eq.s32.totalorder %s23, 1
      %p96 = por %p94, %p95
      %p98 = scmp.ne.s32.totalorder %s81, %s97
      %p99 = scmp.eq.s32.totalorder %s23, 0
      %p100 = por %p98, %p99
      %s101 = ssub.s32 %s24, %s36
      %p102 = scmp.eq.s32.totalorder %s101, 0
      %s104 = sadd.s32 %s103, 1
      %s105 = scalar_select %p102, %s103, %s104
      %p108 = pneg %p102
      %p109 = scmp.eq.s32.totalorder %s17, 1
      %p110 = por %p108, %p109
      %p111 = scmp.ne.s32.totalorder %s103, %s106
      %p112 = scmp.eq.s32.totalorder %s17, 0
      %p113 = por %p111, %p112
      %p114 = scmp.ne.s32.totalorder %s103, %s106
      %p115 = scmp.eq.s32.totalorder %s22, 1
      %p116 = por %p114, %p115
      %p117 = scmp.ne.s32.totalorder %s106, %s107
      %p118 = scmp.eq.s32.totalorder %s22, 0
      %p119 = por %p117, %p118
      %p120 = scmp.ne.s32.totalorder %s106, %s107
      %p121 = scmp.eq.s32.totalorder %s23, 1
      %p122 = por %p120, %p121
      %p124 = scmp.ne.s32.totalorder %s107, %s123
      %p125 = scmp.eq.s32.totalorder %s23, 0
      %p126 = por %p124, %p125
      %p127 = scmp.le.s32.totalorder 1, %s17
      %p128 = scmp.lt.s32.totalorder %s17, 3
      %p129 = pnand %p127, %p128
      %p130 = pneg %p129
      // Predicated region
      $region9: #{tpu_custom_call.1} parent=5 // pred_check
        _
      $region10: #{tpu_custom_call.1} parent=5 // pred_check_branch
        %132 = sbr.rel (%p129) target = $region12
      $region11: #{tpu_custom_call.1} parent=5 // pred_region
        %s133 = ssub.s32 %s17, 1
      $region12: #{tpu_custom_call.1} parent=5 // pred_fallthru
        _
      %p134 = scmp.lt.s32.totalorder %s17, 2
      // Predicated region
      $region13: #{tpu_custom_call.1} parent=5 // pred_check
        %p135 = pneg %p134
      $region14: #{tpu_custom_call.1} parent=5 // pred_check_branch
        %137 = sbr.rel (%p135) target = $region16
      $region15: #{tpu_custom_call.1} parent=5 // pred_region
        // Predicated region
        $region17: #{tpu_custom_call.1} parent=15 // pred_check
          %p138 = pneg %p55
        $region18: #{tpu_custom_call.1} parent=15 // pred_check_branch
          %140 = sbr.rel (%p138) target = $region20
        $region19: #{tpu_custom_call.1} parent=15 // pred_region
          %s141 = sand.u32 %s45, 1
          %s142 = scalar_lea.sflag [#allocation3], %s141
          %s143 = sand.u32 %s45, 1
          %s144 = smul.addr %s143, 256
          %s145 = scalar_lea.vmem [#allocation2], %s144
          %s146 = sadd.s32 %s24, %s25
          %p147 = scmp.lt.s32.totalorder %s146, 0
          %s148 = scalar_select %p147, %s146, 0
          %s149 = smul.u32 32, %s148
          %s150 = ssub.s32 2, %s149
          %s151 = smul.u32 128, %s150
          %s153 = ssub.s32 4096, %s151
          %154 = vsyncadd %s142, %s153
          %p155 = scmp.ne.s32.totalorder 0, %s151
          %s156 = smul.addr %s149, 128
          %s157 = scalar_lea.hbm %s0, %s156
          %s158 = smul.u32 8, %s150
          %s159 = sshll.u32 %s145, 4
          %s160 = int_to_ptr.vmem [resolvable:$true] %s159
          %s161 = sshll.u32 %s158, 4
          %165 = dma.hbm_to_vmem [thread:$0]  (%p155), %s157, %s161, %s160, %s142, 128, 128, 8
        $region20: #{tpu_custom_call.1} parent=15 // pred_fallthru
          _
        // Predicated region
        $region21: #{tpu_custom_call.1} parent=15 // pred_check
          %p166 = pneg %p87
        $region22: #{tpu_custom_call.1} parent=15 // pred_check_branch
          %168 = sbr.rel (%p166) target = $region24
        $region23: #{tpu_custom_call.1} parent=15 // pred_region
          %s169 = sand.u32 %s77, 1
          %s170 = scalar_lea.sflag [#allocation6], %s169
          %s171 = sand.u32 %s77, 1
          %s172 = smul.addr %s171, 256
          %s173 = scalar_lea.vmem [#allocation5], %s172
          %s174 = sadd.s32 %s24, %s25
          %p175 = scmp.lt.s32.totalorder %s174, 0
          %s176 = scalar_select %p175, %s174, 0
          %s177 = smul.u32 32, %s176
          %s178 = ssub.s32 2, %s177
          %s179 = smul.u32 128, %s178
          %s181 = ssub.s32 4096, %s179
          %182 = vsyncadd %s170, %s181
          %p183 = scmp.ne.s32.totalorder 0, %s179
          %s184 = smul.addr %s177, 128
          %s185 = scalar_lea.hbm %s1, %s184
          %s186 = smul.u32 8, %s178
          %s187 = sshll.u32 %s173, 4
          %s188 = int_to_ptr.vmem [resolvable:$true] %s187
          %s189 = sshll.u32 %s186, 4
          %193 = dma.hbm_to_vmem [thread:$0]  (%p183), %s185, %s189, %s188, %s170, 128, 128, 8
        $region24: #{tpu_custom_call.1} parent=15 // pred_fallthru
          _
      $region16: #{tpu_custom_call.1} parent=5 // pred_fallthru
        _
      %p194 = scmp.le.s32.totalorder 1, %s17
      %p195 = scmp.lt.s32.totalorder %s17, 3
      %p196 = pnand %p194, %p195
      %p197 = pneg %p196
      // Predicated region
      $region25: #{tpu_custom_call.1} parent=5 // pred_check
        _
      $region26: #{tpu_custom_call.1} parent=5 // pred_check_branch
        %199 = sbr.rel (%p196) target = $region28
      $region27: #{tpu_custom_call.1} parent=5 // pred_region
        %s200 = ssub.s32 %s17, 1
        %s201 = sand.u32 %s48, 1
        %s202 = scalar_lea.sflag [#allocation3], %s201
        %s203 = sand.u32 %s48, 1
        %s204 = smul.addr %s203, 256
        %s205 = scalar_lea.vmem [#allocation2], %s204
        // Predicated region
        $region29: #{tpu_custom_call.1} parent=27 // pred_check
          %p206 = pneg %p61
        $region30: #{tpu_custom_call.1} parent=27 // pred_check_branch
          %208 = sbr.rel (%p206) target = $region32
        $region31: #{tpu_custom_call.1} parent=27 // pred_region
          %209 = dma.done %s202, 4096
        $region32: #{tpu_custom_call.1} parent=27 // pred_fallthru
          _
        %s210 = sand.u32 %s80, 1
        %s211 = scalar_lea.sflag [#allocation6], %s210
        %s212 = sand.u32 %s80, 1
        %s213 = smul.addr %s212, 256
        %s214 = scalar_lea.vmem [#allocation5], %s213
        // Predicated region
        $region33: #{tpu_custom_call.1} parent=27 // pred_check
          %p215 = pneg %p93
        $region34: #{tpu_custom_call.1} parent=27 // pred_check_branch
          %217 = sbr.rel (%p215) target = $region36
        $region35: #{tpu_custom_call.1} parent=27 // pred_region
          %218 = dma.done %s211, 4096
        $region36: #{tpu_custom_call.1} parent=27 // pred_fallthru
          _
        %s219 = sand.u32 %s48, 1
        %s220 = scalar_lea.sflag [#allocation3], %s219
        %s221 = sand.u32 %s48, 1
        %s222 = smul.addr %s221, 256
        %s223 = scalar_lea.vmem [#allocation2], %s222
        %p224 = pneg %p61
        %p225 = pneg %p58
        %s226 = sand.u32 %s80, 1
        %s227 = scalar_lea.sflag [#allocation6], %s226
        %s228 = sand.u32 %s80, 1
        %s229 = smul.addr %s228, 256
        %s230 = scalar_lea.vmem [#allocation5], %s229
        %p231 = pneg %p93
        %p232 = pneg %p90
        %p233 = pneg %p119
        %p234 = pneg %p116
        %s235 = sand.u32 %s106, 1
        %s236 = scalar_lea.sflag [#allocation4], %s235
        %s237 = sand.u32 %s106, 1
        %s238 = smul.addr %s237, 8
        %s239 = scalar_lea.vmem [#allocation7], %s238
        %s240 = sadd.s32 %s26, %s27
        %p241 = scmp.lt.s32.totalorder %s240, 0
        %s242 = scalar_select %p241, %s240, 0
        %s243 = smul.u32 32, %s242
        %s244 = ssub.s32 2, %s243
        %s245 = smul.u32 128, %s244
        %s246 = sadd.s32 %s26, %s27
        %p247 = scmp.lt.s32.totalorder %s246, 0
        %s248 = scalar_select %p247, %s246, 0
        %s249 = smul.u32 32, %s248
        %s250 = ssub.s32 2, %s249
        %s251 = smul.u32 128, %s250
        %p252 = scmp.eq.s32.totalorder %s27, 0
        // Predicated region
        $region37: #{tpu_custom_call.1} parent=27 // pred_check
          %p253 = pneg %p252
        $region38: #{tpu_custom_call.1} parent=27 // pred_check_branch
          %255 = sbr.rel (%p253) target = $region40
        $region39: #{tpu_custom_call.1} parent=27 // pred_region
          %256 = vst [vmem:[%s239] sm:$0xff] 0.0
        $region40: #{tpu_custom_call.1} parent=27 // pred_fallthru
          _
        %s257 = sadd.s32 %s26, %s27
        %s258 = smul.u32 %s257, 256
        %v259 = vld [vmem:[%s205] sm:$0xff]
        %v260 = vld [vmem:[%s205 + $0x8] sm:$0xff]
        %v261 = vld [vmem:[%s205 + $0x10] sm:$0xff]
        %v262 = vld [vmem:[%s205 + $0x18] sm:$0xff]
        %v263 = vld [vmem:[%s205 + $0x20] sm:$0xff]
        %v264 = vld [vmem:[%s205 + $0x28] sm:$0xff]
        %v265 = vld [vmem:[%s205 + $0x30] sm:$0xff]
        %v266 = vld [vmem:[%s205 + $0x38] sm:$0xff]
        %v267 = vld [vmem:[%s205 + $0x40] sm:$0xff]
        %v268 = vld [vmem:[%s205 + $0x48] sm:$0xff]
        %v269 = vld [vmem:[%s205 + $0x50] sm:$0xff]
        %v270 = vld [vmem:[%s205 + $0x58] sm:$0xff]
        %v271 = vld [vmem:[%s205 + $0x60] sm:$0xff]
        %v272 = vld [vmem:[%s205 + $0x68] sm:$0xff]
        %v273 = vld [vmem:[%s205 + $0x70] sm:$0xff]
        %v274 = vld [vmem:[%s205 + $0x78] sm:$0xff]
        %v275 = vld [vmem:[%s205 + $0x80] sm:$0xff]
        %v276 = vld [vmem:[%s205 + $0x88] sm:$0xff]
        %v277 = vld [vmem:[%s205 + $0x90] sm:$0xff]
        %v278 = vld [vmem:[%s205 + $0x98] sm:$0xff]
        %v279 = vld [vmem:[%s205 + $0xa0] sm:$0xff]
        %v280 = vld [vmem:[%s205 + $0xa8] sm:$0xff]
        %v281 = vld [vmem:[%s205 + $0xb0] sm:$0xff]
        %v282 = vld [vmem:[%s205 + $0xb8] sm:$0xff]
        %v283 = vld [vmem:[%s205 + $0xc0] sm:$0xff]
        %v284 = vld [vmem:[%s205 + $0xc8] sm:$0xff]
        %v285 = vld [vmem:[%s205 + $0xd0] sm:$0xff]
        %v286 = vld [vmem:[%s205 + $0xd8] sm:$0xff]
        %v287 = vld [vmem:[%s205 + $0xe0] sm:$0xff]
        %v288 = vld [vmem:[%s205 + $0xe8] sm:$0xff]
        %v289 = vld [vmem:[%s205 + $0xf0] sm:$0xff]
        %v290 = vld [vmem:[%s205 + $0xf8] sm:$0xff]
        %v291 = vld [vmem:[%s214] sm:$0xff]
        %v292 = vld [vmem:[%s214 + $0x8] sm:$0xff]
        %v293 = vld [vmem:[%s214 + $0x10] sm:$0xff]
        %v294 = vld [vmem:[%s214 + $0x18] sm:$0xff]
        %v295 = vld [vmem:[%s214 + $0x20] sm:$0xff]
        %v296 = vld [vmem:[%s214 + $0x28] sm:$0xff]
        %v297 = vld [vmem:[%s214 + $0x30] sm:$0xff]
        %v298 = vld [vmem:[%s214 + $0x38] sm:$0xff]
        %v299 = vld [vmem:[%s214 + $0x40] sm:$0xff]
        %v300 = vld [vmem:[%s214 + $0x48] sm:$0xff]
        %v301 = vld [vmem:[%s214 + $0x50] sm:$0xff]
        %v302 = vld [vmem:[%s214 + $0x58] sm:$0xff]
        %v303 = vld [vmem:[%s214 + $0x60] sm:$0xff]
        %v304 = vld [vmem:[%s214 + $0x68] sm:$0xff]
        %v305 = vld [vmem:[%s214 + $0x70] sm:$0xff]
        %v306 = vld [vmem:[%s214 + $0x78] sm:$0xff]
        %v307 = vld [vmem:[%s214 + $0x80] sm:$0xff]
        %v308 = vld [vmem:[%s214 + $0x88] sm:$0xff]
        %v309 = vld [vmem:[%s214 + $0x90] sm:$0xff]
        %v310 = vld [vmem:[%s214 + $0x98] sm:$0xff]
        %v311 = vld [vmem:[%s214 + $0xa0] sm:$0xff]
        %v312 = vld [vmem:[%s214 + $0xa8] sm:$0xff]
        %v313 = vld [vmem:[%s214 + $0xb0] sm:$0xff]
        %v314 = vld [vmem:[%s214 + $0xb8] sm:$0xff]
        %v315 = vld [vmem:[%s214 + $0xc0] sm:$0xff]
        %v316 = vld [vmem:[%s214 + $0xc8] sm:$0xff]
        %v317 = vld [vmem:[%s214 + $0xd0] sm:$0xff]
        %v318 = vld [vmem:[%s214 + $0xd8] sm:$0xff]
        %v319 = vld [vmem:[%s214 + $0xe0] sm:$0xff]
        %v320 = vld [vmem:[%s214 + $0xe8] sm:$0xff]
        %v321 = vld [vmem:[%s214 + $0xf0] sm:$0xff]
        %v322 = vld [vmem:[%s214 + $0xf8] sm:$0xff]
        %v323 = vsub.f32 %v259, %v291
        %v324 = vsub.f32 %v260, %v292
        %v325 = vsub.f32 %v261, %v293
        %v326 = vsub.f32 %v262, %v294
        %v327 = vsub.f32 %v263, %v295
        %v328 = vsub.f32 %v264, %v296
        %v329 = vsub.f32 %v265, %v297
        %v330 = vsub.f32 %v266, %v298
        %v331 = vsub.f32 %v267, %v299
        %v332 = vsub.f32 %v268, %v300
        %v333 = vsub.f32 %v269, %v301
        %v334 = vsub.f32 %v270, %v302
        %v335 = vsub.f32 %v271, %v303
        %v336 = vsub.f32 %v272, %v304
        %v337 = vsub.f32 %v273, %v305
        %v338 = vsub.f32 %v274, %v306
        %v339 = vsub.f32 %v275, %v307
        %v340 = vsub.f32 %v276, %v308
        %v341 = vsub.f32 %v277, %v309
        %v342 = vsub.f32 %v278, %v310
        %v343 = vsub.f32 %v279, %v311
        %v344 = vsub.f32 %v280, %v312
        %v345 = vsub.f32 %v281, %v313
        %v346 = vsub.f32 %v282, %v314
        %v347 = vsub.f32 %v283, %v315
        %v348 = vsub.f32 %v284, %v316
        %v349 = vsub.f32 %v285, %v317
        %v350 = vsub.f32 %v286, %v318
        %v351 = vsub.f32 %v287, %v319
        %v352 = vsub.f32 %v288, %v320
        %v353 = vsub.f32 %v289, %v321
        %v354 = vsub.f32 %v290, %v322
        %v355 = vmul.f32 %v323, %v323
        %v356 = vmul.f32 %v324, %v324
        %v357 = vmul.f32 %v325, %v325
        %v358 = vmul.f32 %v326, %v326
        %v359 = vmul.f32 %v327, %v327
        %v360 = vmul.f32 %v328, %v328
        %v361 = vmul.f32 %v329, %v329
        %v362 = vmul.f32 %v330, %v330
        %v363 = vmul.f32 %v331, %v331
        %v364 = vmul.f32 %v332, %v332
        %v365 = vmul.f32 %v333, %v333
        %v366 = vmul.f32 %v334, %v334
        %v367 = vmul.f32 %v335, %v335
        %v368 = vmul.f32 %v336, %v336
        %v369 = vmul.f32 %v337, %v337
        %v370 = vmul.f32 %v338, %v338
        %v371 = vmul.f32 %v339, %v339
        %v372 = vmul.f32 %v340, %v340
        %v373 = vmul.f32 %v341, %v341
        %v374 = vmul.f32 %v342, %v342
        %v375 = vmul.f32 %v343, %v343
        %v376 = vmul.f32 %v344, %v344
        %v377 = vmul.f32 %v345, %v345
        %v378 = vmul.f32 %v346, %v346
        %v379 = vmul.f32 %v347, %v347
        %v380 = vmul.f32 %v348, %v348
        %v381 = vmul.f32 %v349, %v349
        %v382 = vmul.f32 %v350, %v350
        %v383 = vmul.f32 %v351, %v351
        %v384 = vmul.f32 %v352, %v352
        %v385 = vmul.f32 %v353, %v353
        %v386 = vmul.f32 %v354, %v354
        %s387 = sadd.s32 %s258, 0
        %v388 = vlaneseq
        %v389 = vshrl.u32 %v388, 7
        %v390 = vadd.s32 %v389, 8
        %v391 = vadd.s32 %v389, 16
        %v392 = vadd.s32 %v389, 24
        %v393 = vadd.s32 %v389, 32
        %v394 = vadd.s32 %v389, 40
        %v395 = vadd.s32 %v389, 48
        %v396 = vadd.s32 %v389, 56
        %v397 = vadd.s32 %v389, 64
        %v398 = vadd.s32 %v389, 72
        %v399 = vadd.s32 %v389, 80
        %v400 = vadd.s32 %v389, 88
        %v401 = vadd.s32 %v389, 96
        %v402 = vadd.s32 %v389, 104
        %v403 = vadd.s32 %v389, 112
        %v404 = vadd.s32 %v389, 120
        %v405 = vadd.s32 %v389, 128
        %v406 = vadd.s32 %v389, 136
        %v407 = vadd.s32 %v389, 144
        %v408 = vadd.s32 %v389, 152
        %v409 = vadd.s32 %v389, 160
        %v410 = vadd.s32 %v389, 168
        %v411 = vadd.s32 %v389, 176
        %v412 = vadd.s32 %v389, 184
        %v413 = vadd.s32 %v389, 192
        %v414 = vadd.s32 %v389, 200
        %v415 = vadd.s32 %v389, 208
        %v416 = vadd.s32 %v389, 216
        %v417 = vadd.s32 %v389, 224
        %v418 = vadd.s32 %v389, 232
        %v419 = vadd.s32 %v389, 240
        %v420 = vadd.s32 %v389, 248
        %v421 = vstv %s387
        %v422 = vadd.s32 %v421, %v389
        %v423 = vadd.s32 %v421, %v390
        %v424 = vadd.s32 %v421, %v391
        %v425 = vadd.s32 %v421, %v392
        %v426 = vadd.s32 %v421, %v393
        %v427 = vadd.s32 %v421, %v394
        %v428 = vadd.s32 %v421, %v395
        %v429 = vadd.s32 %v421, %v396
        %v430 = vadd.s32 %v421, %v397
        %v431 = vadd.s32 %v421, %v398
        %v432 = vadd.s32 %v421, %v399
        %v433 = vadd.s32 %v421, %v400
        %v434 = vadd.s32 %v421, %v401
        %v435 = vadd.s32 %v421, %v402
        %v436 = vadd.s32 %v421, %v403
        %v437 = vadd.s32 %v421, %v404
        %v438 = vadd.s32 %v421, %v405
        %v439 = vadd.s32 %v421, %v406
        %v440 = vadd.s32 %v421, %v407
        %v441 = vadd.s32 %v421, %v408
        %v442 = vadd.s32 %v421, %v409
        %v443 = vadd.s32 %v421, %v410
        %v444 = vadd.s32 %v421, %v411
        %v445 = vadd.s32 %v421, %v412
        %v446 = vadd.s32 %v421, %v413
        %v447 = vadd.s32 %v421, %v414
        %v448 = vadd.s32 %v421, %v415
        %v449 = vadd.s32 %v421, %v416
        %v450 = vadd.s32 %v421, %v417
        %v451 = vadd.s32 %v421, %v418
        %v452 = vadd.s32 %v421, %v419
        %v453 = vadd.s32 %v421, %v420
        %vm454 = vcmp.lt.s32.totalorder %v422, 16
        %vm455 = vcmp.lt.s32.totalorder %v423, 16
        %vm456 = vcmp.lt.s32.totalorder %v424, 16
        %vm457 = vcmp.lt.s32.totalorder %v425, 16
        %vm458 = vcmp.lt.s32.totalorder %v426, 16
        %vm459 = vcmp.lt.s32.totalorder %v427, 16
        %vm460 = vcmp.lt.s32.totalorder %v428, 16
        %vm461 = vcmp.lt.s32.totalorder %v429, 16
        %vm462 = vcmp.lt.s32.totalorder %v430, 16
        %vm463 = vcmp.lt.s32.totalorder %v431, 16
        %vm464 = vcmp.lt.s32.totalorder %v432, 16
        %vm465 = vcmp.lt.s32.totalorder %v433, 16
        %vm466 = vcmp.lt.s32.totalorder %v434, 16
        %vm467 = vcmp.lt.s32.totalorder %v435, 16
        %vm468 = vcmp.lt.s32.totalorder %v436, 16
        %vm469 = vcmp.lt.s32.totalorder %v437, 16
        %vm470 = vcmp.lt.s32.totalorder %v438, 16
        %vm471 = vcmp.lt.s32.totalorder %v439, 16
        %vm472 = vcmp.lt.s32.totalorder %v440, 16
        %vm473 = vcmp.lt.s32.totalorder %v441, 16
        %vm474 = vcmp.lt.s32.totalorder %v442, 16
        %vm475 = vcmp.lt.s32.totalorder %v443, 16
        %vm476 = vcmp.lt.s32.totalorder %v444, 16
        %vm477 = vcmp.lt.s32.totalorder %v445, 16
        %vm478 = vcmp.lt.s32.totalorder %v446, 16
        %vm479 = vcmp.lt.s32.totalorder %v447, 16
        %vm480 = vcmp.lt.s32.totalorder %v448, 16
        %vm481 = vcmp.lt.s32.totalorder %v449, 16
        %vm482 = vcmp.lt.s32.totalorder %v450, 16
        %vm483 = vcmp.lt.s32.totalorder %v451, 16
        %vm484 = vcmp.lt.s32.totalorder %v452, 16
        %vm485 = vcmp.lt.s32.totalorder %v453, 16
        %v486 = vsel %vm454, %v355, 0.0
        %v487 = vsel %vm455, %v356, 0.0
        %v488 = vsel %vm456, %v357, 0.0
        %v489 = vsel %vm457, %v358, 0.0
        %v490 = vsel %vm458, %v359, 0.0
        %v491 = vsel %vm459, %v360, 0.0
        %v492 = vsel %vm460, %v361, 0.0
        %v493 = vsel %vm461, %v362, 0.0
        %v494 = vsel %vm462, %v363, 0.0
        %v495 = vsel %vm463, %v364, 0.0
        %v496 = vsel %vm464, %v365, 0.0
        %v497 = vsel %vm465, %v366, 0.0
        %v498 = vsel %vm466, %v367, 0.0
        %v499 = vsel %vm467, %v368, 0.0
        %v500 = vsel %vm468, %v369, 0.0
        %v501 = vsel %vm469, %v370, 0.0
        %v502 = vsel %vm470, %v371, 0.0
        %v503 = vsel %vm471, %v372, 0.0
        %v504 = vsel %vm472, %v373, 0.0
        %v505 = vsel %vm473, %v374, 0.0
        %v506 = vsel %vm474, %v375, 0.0
        %v507 = vsel %vm475, %v376, 0.0
        %v508 = vsel %vm476, %v377, 0.0
        %v509 = vsel %vm477, %v378, 0.0
        %v510 = vsel %vm478, %v379, 0.0
        %v511 = vsel %vm479, %v380, 0.0
        %v512 = vsel %vm480, %v381, 0.0
        %v513 = vsel %vm481, %v382, 0.0
        %v514 = vsel %vm482, %v383, 0.0
        %v515 = vsel %vm483, %v384, 0.0
        %v516 = vsel %vm484, %v385, 0.0
        %v517 = vsel %vm485, %v386, 0.0
        %v518 = vadd.f32 %v486, %v487
        %v519 = vadd.f32 %v518, %v488
        %v520 = vadd.f32 %v519, %v489
        %v521 = vadd.f32 %v520, %v490
        %v522 = vadd.f32 %v521, %v491
        %v523 = vadd.f32 %v522, %v492
        %v524 = vadd.f32 %v523, %v493
        %v525 = vadd.f32 %v524, %v494
        %v526 = vadd.f32 %v525, %v495
        %v527 = vadd.f32 %v526, %v496
        %v528 = vadd.f32 %v527, %v497
        %v529 = vadd.f32 %v528, %v498
        %v530 = vadd.f32 %v529, %v499
        %v531 = vadd.f32 %v530, %v500
        %v532 = vadd.f32 %v531, %v501
        %v533 = vadd.f32 %v532, %v502
        %v534 = vadd.f32 %v533, %v503
        %v535 = vadd.f32 %v534, %v504
        %v536 = vadd.f32 %v535, %v505
        %v537 = vadd.f32 %v536, %v506
        %v538 = vadd.f32 %v537, %v507
        %v539 = vadd.f32 %v538, %v508
        %v540 = vadd.f32 %v539, %v509
        %v541 = vadd.f32 %v540, %v510
        %v542 = vadd.f32 %v541, %v511
        %v543 = vadd.f32 %v542, %v512
        %v544 = vadd.f32 %v543, %v513
        %v545 = vadd.f32 %v544, %v514
        %v546 = vadd.f32 %v545, %v515
        %v547 = vadd.f32 %v546, %v516
        %v548 = vadd.f32 %v547, %v517
        %v549 = vadd.f32 %v548, 0.0
        %v550 = vld [vmem:[%s239] sm:$0xff]
        %v551 = vadd.f32 %v550, %v549
        %552 = vst [vmem:[%s239] sm:$0xff] %v551
        %s553 = sand.u32 %s106, 1
        %s554 = scalar_lea.sflag [#allocation4], %s553
        %s555 = sand.u32 %s106, 1
        %s556 = smul.addr %s555, 8
        %s557 = scalar_lea.vmem [#allocation7], %s556
        // Predicated region
        $region41: #{tpu_custom_call.1} parent=27 // pred_check
          %p558 = pneg %p116
        $region42: #{tpu_custom_call.1} parent=27 // pred_check_branch
          %560 = sbr.rel (%p558) target = $region44
        $region43: #{tpu_custom_call.1} parent=27 // pred_region
          %s562 = ssub.s32 128, 128
          %563 = vsyncadd %s554, %s562
          %s564 = smul.addr %s26, 128
          %s565 = scalar_lea.hbm %s2, %s564
          %s567 = sshll.u32 %s557, 4
          %s568 = int_to_ptr.vmem [resolvable:$true] %s567
          %570 = dma.vmem_to_hbm [thread:$0]  %s568, 128, %s565, %s554
        $region44: #{tpu_custom_call.1} parent=27 // pred_fallthru
          _
      $region28: #{tpu_custom_call.1} parent=5 // pred_fallthru
        _
      %p571 = scmp.le.s32.totalorder 2, %s17
      // Predicated region
      $region45: #{tpu_custom_call.1} parent=5 // pred_check
        %p572 = pneg %p571
      $region46: #{tpu_custom_call.1} parent=5 // pred_check_branch
        %574 = sbr.rel (%p572) target = $region48
      $region47: #{tpu_custom_call.1} parent=5 // pred_region
        %s575 = ssub.s32 %s17, 2
        // Predicated region
        $region49: #{tpu_custom_call.1} parent=47 // pred_check
          %p576 = pneg %p122
        $region50: #{tpu_custom_call.1} parent=47 // pred_check_branch
          %578 = sbr.rel (%p576) target = $region52
        $region51: #{tpu_custom_call.1} parent=47 // pred_region
          %s579 = sand.u32 %s107, 1
          %s580 = scalar_lea.sflag [#allocation4], %s579
          %s581 = sand.u32 %s107, 1
          %s582 = smul.addr %s581, 8
          %s583 = scalar_lea.vmem [#allocation7], %s582
          %584 = dma.done %s580, 128
        $region52: #{tpu_custom_call.1} parent=47 // pred_fallthru
          _
      $region48: #{tpu_custom_call.1} parent=5 // pred_fallthru
        _
    $region6: #{tpu_custom_call.1} parent=1 // loop_footer
      %s21 = sadd.s32 1, %s17
    $region7: #{tpu_custom_call.1} parent=1 // loop_footer_branch
      %16 = sbr.rel target = $region3
    $region8: #{tpu_custom_call.1} parent=1 // loop_exit
      _
    %585 = vsyncpa [#allocation3], 1
    %s586 = scalar_lea.sflag [#allocation3], 1
    %587 = vsyncpa %s586, 1
    %588 = vsyncpa [#allocation6], 1
    %s589 = scalar_lea.sflag [#allocation6], 1
    %590 = vsyncpa %s589, 1
    %591 = vsyncpa [#allocation4], 1
    %s592 = scalar_lea.sflag [#allocation4], 1
    %593 = vsyncpa %s592, 1

</llo_original>
